<compile_context>
chip_gen: v7x
topology: tpu7x:2x2x1
jax: 0.10.0
libtpu: 0.0.40
codegen_flags: <defaults>
</compile_context>

<pallas_src>
import functools
import math

import jax
import jax.numpy as jnp
from jax.experimental import pallas as pl
from jax.experimental.pallas import tpu as pltpu  # noqa: F401  (TPU backend assumed)


# ------------------------- small helpers (inside-kernel) -------------------------

def _ln_rows(x, g, b, eps):
    """Row-wise layernorm; g/b are [1, D]."""
    mean = jnp.mean(x, axis=-1, keepdims=True)
    var = jnp.mean((x - mean) ** 2, axis=-1, keepdims=True)
    return (x - mean) * jax.lax.rsqrt(var + eps) * g + b


# ------------------------- Pallas kernels -------------------------

def _linear_kernel(x_ref, w_ref, b_ref, o_ref, *, activation):
    y = jnp.dot(x_ref[...], w_ref[...], preferred_element_type=jnp.float32)
    y = y + b_ref[...]
    if activation == "relu":
        y = jnp.maximum(y, 0.0)
    o_ref[...] = y.astype(o_ref.dtype)


def linear(x, w, b, activation=None):
    """y = x @ w + b  (x: [M, K], w: [K, N], b: [N]).  Single-invocation kernel."""
    M, _ = x.shape
    N = w.shape[1]
    return pl.pallas_call(
        functools.partial(_linear_kernel, activation=activation),
        out_shape=jax.ShapeDtypeStruct((M, N), jnp.float32),
    )(x, w, b.reshape(1, N))


def _pooler_kernel(mem_ref, bias_ref, pk_ref, wq_ref, bq_ref, wkv_ref, bkv_ref,
                   wo_ref, bo_ref, o_ref, *, heads):
    """Fused MultiheadAttention pooler: single query per batch row, key padding mask."""
    mem = mem_ref[...]                              # [Bm, N, Dk]
    Bm, N, Dk = mem.shape
    E = wq_ref.shape[1]
    Dh = E // heads
    scale = 1.0 / math.sqrt(Dh)

    pk = jnp.broadcast_to(pk_ref[...], (Bm, pk_ref.shape[1]))            # [Bm, E]
    q = jnp.dot(pk, wq_ref[...], preferred_element_type=jnp.float32) + bq_ref[...]
    kv = jnp.dot(mem.reshape(Bm * N, Dk), wkv_ref[...],
                 preferred_element_type=jnp.float32) + bkv_ref[...]      # [Bm*N, 2E]
    kv = kv.reshape(Bm, N, 2 * E)
    k = kv[:, :, :E]
    v = kv[:, :, E:]
    bias = bias_ref[...]                            # [Bm, N] additive key-padding mask

    head_outs = []
    for h in range(heads):
        qh = q[:, h * Dh:(h + 1) * Dh]              # [Bm, Dh]
        kh = k[:, :, h * Dh:(h + 1) * Dh]           # [Bm, N, Dh]
        vh = v[:, :, h * Dh:(h + 1) * Dh]           # [Bm, N, Dh]
        s = jnp.sum(kh * qh[:, None, :], axis=-1) * scale + bias         # [Bm, N]
        s = s - jnp.max(s, axis=-1, keepdims=True)
        p = jnp.exp(s)
        p = p * pl.reciprocal(jnp.sum(p, axis=-1, keepdims=True), approx=True)
        head_outs.append(jnp.sum(p[:, :, None] * vh, axis=1))            # [Bm, Dh]
    attn = jnp.concatenate(head_outs, axis=-1)                           # [Bm, E]
    out = jnp.dot(attn, wo_ref[...], preferred_element_type=jnp.float32) + bo_ref[...]
    o_ref[...] = out.astype(o_ref.dtype)


def pooler_attention(memory, batch_mask, pool_keys, p, heads):
    Bm, N, _ = memory.shape
    E = p["wq"].shape[1]
    kpm_bias = jnp.where(batch_mask, 0.0, -1e9).astype(jnp.float32)      # [Bm, N]
    return pl.pallas_call(
        functools.partial(_pooler_kernel, heads=heads),
        out_shape=jax.ShapeDtypeStruct((Bm, E), jnp.float32),
    )(memory, kpm_bias, pool_keys.reshape(1, E),
      p["wq"], p["bq"].reshape(1, -1),
      p["wkv"], p["bkv"].reshape(1, -1),
      p["wo"], p["bo"].reshape(1, -1))


def _decoder_layer_kernel(x_ref, bias_ref, wqkv_ref, bqkv_ref, wo_ref, bo_ref,
                          ln1g_ref, ln1b_ref, w1_ref, b1_ref, w2_ref, b2_ref,
                          ln2g_ref, ln2b_ref, o_ref, *, heads, eps):
    """Fused post-norm TransformerEncoderLayer (self-attn + FFN), eval mode."""
    x = x_ref[...]                                   # [B, L, E]
    B, L, E = x.shape
    Dh = E // heads
    scale = 1.0 / math.sqrt(Dh)
    xf = x.reshape(B * L, E)

    qkv = jnp.dot(xf, wqkv_ref[...], preferred_element_type=jnp.float32) + bqkv_ref[...]
    qkv = qkv.reshape(B, L, 3 * E)
    bias = bias_ref[...]                             # [L, L] additive attention mask

    head_outs = []
    for h in range(heads):
        qh = qkv[:, :, h * Dh:(h + 1) * Dh]                              # [B, L, Dh]
        kh = qkv[:, :, E + h * Dh:E + (h + 1) * Dh]
        vh = qkv[:, :, 2 * E + h * Dh:2 * E + (h + 1) * Dh]
        s = jnp.einsum("bqd,bkd->bqk", qh, kh,
                       preferred_element_type=jnp.float32) * scale       # [B, L, L]
        s = s + bias[None, :, :]
        s = s - jnp.max(s, axis=-1, keepdims=True)
        p = jnp.exp(s)
        p = p * pl.reciprocal(jnp.sum(p, axis=-1, keepdims=True), approx=True)
        head_outs.append(jnp.einsum("bqk,bkd->bqd", p, vh,
                                    preferred_element_type=jnp.float32))  # [B, L, Dh]
    attn = jnp.concatenate(head_outs, axis=-1).reshape(B * L, E)
    attn = jnp.dot(attn, wo_ref[...], preferred_element_type=jnp.float32) + bo_ref[...]

    h1 = _ln_rows(xf + attn, ln1g_ref[...], ln1b_ref[...], eps)
    ff = jnp.maximum(jnp.dot(h1, w1_ref[...], preferred_element_type=jnp.float32)
                     + b1_ref[...], 0.0)
    ff = jnp.dot(ff, w2_ref[...], preferred_element_type=jnp.float32) + b2_ref[...]
    out = _ln_rows(h1 + ff, ln2g_ref[...], ln2b_ref[...], eps)
    o_ref[...] = out.reshape(B, L, E).astype(o_ref.dtype)


def decoder_layer(x, p, heads, attn_bias, eps=1e-5):
    B, L, E = x.shape
    return pl.pallas_call(
        functools.partial(_decoder_layer_kernel, heads=heads, eps=eps),
        out_shape=jax.ShapeDtypeStruct((B, L, E), jnp.float32),
    )(x, attn_bias,
      p["wqkv"], p["bqkv"].reshape(1, -1),
      p["wo"], p["bo"].reshape(1, -1),
      p["ln1_g"].reshape(1, -1), p["ln1_b"].reshape(1, -1),
      p["w1"], p["b1"].reshape(1, -1),
      p["w2"], p["b2"].reshape(1, -1),
      p["ln2_g"].reshape(1, -1), p["ln2_b"].reshape(1, -1))


def _head_kernel(x_ref, w1_ref, b1_ref, w2_ref, b2_ref, o_ref):
    h = jnp.maximum(jnp.dot(x_ref[...], w1_ref[...],
                            preferred_element_type=jnp.float32) + b1_ref[...], 0.0)
    o_ref[...] = (jnp.dot(h, w2_ref[...], preferred_element_type=jnp.float32)
                  + b2_ref[...]).astype(o_ref.dtype)


def output_head(x2d, w1, b1, w2, b2, n_words):
    """Fused Linear -> ReLU -> Linear with vocab dim padded to 128 lanes."""
    M, _ = x2d.shape
    v_pad = ((n_words + 127) // 128) * 128
    w2p = jnp.pad(w2, ((0, 0), (0, v_pad - n_words)))
    b2p = jnp.pad(b2, (0, v_pad - n_words))
    out = pl.pallas_call(
        _head_kernel,
        out_shape=jax.ShapeDtypeStruct((M, v_pad), jnp.float32),
    )(x2d, w1, b1.reshape(1, -1), w2p, b2p.reshape(1, -1))
    return out[:, :n_words]


# ------------------------- irregular glue (plain JAX, jit-friendly) -------------------------

def graph2batch(node_feat, batch_mask):
    """answer[batch_mask] = node_feat, done with cumsum+gather (no nonzero)."""
    B, max_node = batch_mask.shape
    flat = batch_mask.reshape(-1)
    pos = jnp.clip(jnp.cumsum(flat.astype(jnp.int32)) - 1, 0, node_feat.shape[0] - 1)
    gathered = jnp.take(node_feat, pos, axis=0)
    out = jnp.where(flat[:, None], gathered, 0.0)
    return out.reshape(B, max_node, node_feat.shape[-1])


def sinusoidal_pe(L, D):
    pos = jnp.arange(L, dtype=jnp.float32)[:, None]
    i = jnp.arange(0, D, 2, dtype=jnp.float32)
    angle = pos / jnp.power(10000.0, i / D)
    pe = jnp.zeros((L, D), jnp.float32)
    pe = pe.at[:, 0::2].set(jnp.sin(angle))
    pe = pe.at[:, 1::2].set(jnp.cos(angle))
    return pe


# ------------------------- forward pass -------------------------

def encode(params, node_feat, batch_mask, molecule_mask, reaction_mask,
           required_ids, edge_index, edge_types, heads):
    # TODO(synk): gnn1 is an externally supplied module; deterministic stand-in = linear + relu.
    x = linear(node_feat, params["gnn1_w"], params["gnn1_b"], activation="relu")
    memory = graph2batch(x, batch_mask)                              # [Bm, max_node, mol_dim]
    mol_feats = pooler_attention(memory, batch_mask, params["pool_keys"],
                                 params["pooler"], heads)            # [Bm, net_dim]

    N = molecule_mask.shape[0]
    mol_pos = jnp.clip(jnp.cumsum(molecule_mask.astype(jnp.int32)) - 1,
                       0, mol_feats.shape[0] - 1)
    x_feat = jnp.where(molecule_mask[:, None], jnp.take(mol_feats, mol_pos, axis=0), 0.0)
    x_feat = jnp.where(reaction_mask[:, None], params["reaction_init"][None, :], x_feat)

    edge_feats = jnp.stack([params["edge_emb"][t] for t in edge_types], axis=0)
    # TODO(synk): gnn2 is an externally supplied module; stand-in = one GCN-style message-passing layer.
    src, dst = edge_index
    msgs = jnp.take(x_feat, src, axis=0) + edge_feats
    agg = jax.ops.segment_sum(msgs, dst, num_segments=N)
    net_x = linear(x_feat + agg, params["gnn2_w"], params["gnn2_b"], activation="relu")
    return jnp.take(net_x, required_ids, axis=0)


def decode(params, memory, labels, attn_bias, heads):
    x_input = jnp.take(params["word_emb"], labels, axis=0)           # [B, L, net_dim]
    seq = jnp.concatenate([memory[:, None, :], x_input], axis=1)     # [B, L+1, net_dim]
    B, L1, E = seq.shape
    # TODO(synk): pos_enc (PE) is an externally supplied module; stand-in = sinusoidal PE add.
    x = seq + sinusoidal_pe(L1, E)[None]
    bias = attn_bias.astype(jnp.float32)                             # [L1, L1], shared by all heads
    for layer in params["dec_layers"]:
        x = decoder_layer(x, layer, heads, bias)
    n_words = params["out_w2"].shape[1]
    logits = output_head(x.reshape(B * L1, E), params["out_w1"], params["out_b1"],
                         params["out_w2"], params["out_b2"], n_words)
    return logits.reshape(B, L1, n_words)


def forward(params, node_feat, batch_mask, molecule_mask, reaction_mask,
            required_ids, edge_index, edge_types, labels, attn_bias, heads):
    reaction_embs = encode(params, node_feat, batch_mask, molecule_mask, reaction_mask,
                           required_ids, edge_index, edge_types, heads)
    return decode(params, reaction_embs, labels, attn_bias, heads)


# ------------------------- parameter init -------------------------

def init_params(key, node_in, molecule_dim, net_dim, heads, dec_layers, n_words):
    keys = iter(jax.random.split(key, 128))

    def nrm(shape, scale=0.1):
        return (scale * jax.random.normal(next(keys), shape)).astype(jnp.float32)

    layers = []
    for _ in range(dec_layers):
        layers.append({
            "wqkv": nrm((net_dim, 3 * net_dim)), "bqkv": nrm((3 * net_dim,)),
            "wo": nrm((net_dim, net_dim)), "bo": nrm((net_dim,)),
            "ln1_g": jnp.ones((net_dim,), jnp.float32),
            "ln1_b": jnp.zeros((net_dim,), jnp.float32),
            "w1": nrm((net_dim, net_dim * 2)), "b1": nrm((net_dim * 2,)),
            "w2": nrm((net_dim * 2, net_dim)), "b2": nrm((net_dim,)),
            "ln2_g": jnp.ones((net_dim,), jnp.float32),
            "ln2_b": jnp.zeros((net_dim,), jnp.float32),
        })

    return {
        "gnn1_w": nrm((node_in, molecule_dim)), "gnn1_b": nrm((molecule_dim,)),
        "gnn2_w": nrm((net_dim, net_dim)), "gnn2_b": nrm((net_dim,)),
        "pool_keys": nrm((1, 1, net_dim)),
        "edge_emb": {"reactant": nrm((net_dim,)), "product": nrm((net_dim,))},
        "reaction_init": nrm((net_dim,)),
        "pooler": {"wq": nrm((net_dim, net_dim)), "bq": nrm((net_dim,)),
                   "wkv": nrm((molecule_dim, 2 * net_dim)), "bkv": nrm((2 * net_dim,)),
                   "wo": nrm((net_dim, net_dim)), "bo": nrm((net_dim,))},
        "word_emb": nrm((n_words, net_dim)),
        "dec_layers": layers,
        "out_w1": nrm((net_dim, net_dim)), "out_b1": nrm((net_dim,)),
        "out_w2": nrm((net_dim, n_words)), "out_b2": nrm((n_words,)),
    }


# ------------------------- main -------------------------

if __name__ == "__main__":
    node_in, molecule_dim, net_dim = 16, 16, 32
    heads, dec_layers, n_words = 4, 2, 24

    key = jax.random.PRNGKey(0)
    k_param, k_node, k_label = jax.random.split(key, 3)
    params = init_params(k_param, node_in, molecule_dim, net_dim, heads, dec_layers, n_words)

    # molecule batch: 3 molecules, up to 8 atoms each
    batch_mask = jnp.array([[1] * 5 + [0] * 3,
                            [1] * 3 + [0] * 5,
                            [1] * 6 + [0] * 2], dtype=bool)
    total_nodes = int(batch_mask.sum())
    node_feat = jax.random.normal(k_node, (total_nodes, node_in), jnp.float32)

    # reaction network: 3 molecule nodes + 2 reaction nodes
    molecule_mask = jnp.array([1, 1, 1, 0, 0], dtype=bool)
    reaction_mask = jnp.array([0, 0, 0, 1, 1], dtype=bool)
    required_ids = jnp.array([3, 4], dtype=jnp.int32)
    edge_index = jnp.array([[0, 1, 3, 2],
                            [3, 3, 2, 4]], dtype=jnp.int32)
    edge_types = ["reactant", "reactant", "product", "reactant"]

    # decoder inputs
    B, L = 2, 7
    labels = jax.random.randint(k_label, (B, L), 0, n_words)
    L1 = L + 1
    causal = jnp.triu(jnp.ones((L1, L1), dtype=bool), k=1)
    attn_bias = jnp.where(causal, -1e9, 0.0).astype(jnp.float32)

    out = forward(params, node_feat, batch_mask, molecule_mask, reaction_mask,
                  required_ids, edge_index, edge_types, labels, attn_bias, heads)
    out = jax.block_until_ready(out)
    assert out.shape == (B, L1, n_words), out.shape
    assert bool(jnp.all(jnp.isfinite(out)))
    print("KERNEL_OK")
</pallas_src>

<mosaic_0001>
module attributes {stable_mosaic.version = 11 : i64} {
  func.func @_linear_kernel(%arg0: memref<14x16xf32, #tpu.memory_space<vmem>>, %arg1: memref<16x16xf32, #tpu.memory_space<vmem>>, %arg2: memref<1x16xf32, #tpu.memory_space<vmem>>, %arg3: memref<14x16xf32, #tpu.memory_space<vmem>>) attributes {dimension_semantics = [], scalar_prefetch = 0 : i64, scratch_operands = 0 : i64, tpu.core_type = #tpu.core_type<tc>} {
    %c0 = arith.constant 0 : index
    %c0_0 = arith.constant 0 : index
    %0 = vector.load %arg0[%c0, %c0_0] : memref<14x16xf32, #tpu.memory_space<vmem>>, vector<14x16xf32>
    %c0_1 = arith.constant 0 : index
    %c0_2 = arith.constant 0 : index
    %1 = vector.load %arg1[%c0_1, %c0_2] : memref<16x16xf32, #tpu.memory_space<vmem>>, vector<16x16xf32>
    %cst = arith.constant dense<0.000000e+00> : vector<14x16xf32>
    %2 = tpu.matmul %0, %1, %cst {dimension_numbers = #tpu.dot_dimension_numbers<[1], [0], [0], [1], [0, 0, 1, 1], [], []>} : vector<14x16xf32>, vector<16x16xf32>, vector<14x16xf32> -> vector<14x16xf32>
    %c0_3 = arith.constant 0 : index
    %c0_4 = arith.constant 0 : index
    %3 = vector.load %arg2[%c0_3, %c0_4] : memref<1x16xf32, #tpu.memory_space<vmem>>, vector<1x16xf32>
    %4 = vector.broadcast %3 : vector<1x16xf32> to vector<14x16xf32>
    %5 = arith.addf %2, %4 : vector<14x16xf32>
    %cst_5 = arith.constant 0.000000e+00 : f32
    %6 = vector.broadcast %cst_5 : f32 to vector<14x16xf32>
    %7 = arith.maximumf %5, %6 : vector<14x16xf32>
    %c0_6 = arith.constant 0 : index
    %c0_7 = arith.constant 0 : index
    %8 = vector.load %arg3[%c0_6, %c0_7] : memref<14x16xf32, #tpu.memory_space<vmem>>, vector<14x16xf32>
    tpu.vector_store %arg3[%c0_6, %c0_7], %7 {strides = array<i32>} : memref<14x16xf32, #tpu.memory_space<vmem>>, vector<14x16xf32>,
    return
  }
}

</mosaic_0001>

<llo_original>
// kernel: tpu_custom_call.1
$region0: #{tpu_custom_call.1}
  #allocation0 [shape = 'u32[]', space=smem, size = 0x4, offset = 0x4, fixed_abs, tag = 'smem constant byte address 0x4 - core index']
  #allocation1 [shape = 'u32[144,128]{1,0:T(1,128)}', space=vmem, size = 0x12000, scoped, tag = 'internal scratch']
  %s0 = inlined_call_operand.hbm [shape: f32[14,16], index: 0, kind: input, shape index: {}]
  %s1 = inlined_call_operand.hbm [shape: f32[16,16], index: 1, kind: input, shape index: {}]
  %s2 = inlined_call_operand.vmem [shape: f32[1,16], index: 2, kind: input, shape index: {}]
  %s3 = inlined_call_operand.hbm [shape: f32[14,16], index: 3, kind: output, shape index: {}]
  %s4 = sld [smem:[#allocation0]]
  $region30: #{tpu_custom_call.1} parent=0
    _
  %s6 = ssub.s32 1, %s4
  %s7 = scalar_select 0, %s6, %s4
  $region1: #{tpu_custom_call.1} parent=0
    #allocation2 [shape = 'u8[8192]{0}', space=vmem, size = 0x2000, scoped, tag = 'input window, operand 0, single buffered']
    #allocation3 [shape = 's32[1]{0}', space=sflag, size = 0x4, scoped, tag = 'scoped memory for tpu_custom_call.1']
    #allocation4 [shape = 's32[1]{0}', space=sflag, size = 0x4, scoped, tag = 'scoped memory for tpu_custom_call.1']
    #allocation5 [shape = 'u8[8192]{0}', space=vmem, size = 0x2000, scoped, tag = 'input window, operand 1, single buffered']
    #allocation6 [shape = 's32[1]{0}', space=sflag, size = 0x4, scoped, tag = 'scoped memory for tpu_custom_call.1']
    #allocation7 [shape = 'u8[8192]{0}', space=vmem, size = 0x2000, scoped, tag = 'output window, operand 0, single buffered']
    %8 = vsyncpa [#allocation3], 0
    %9 = vsyncpa [#allocation6], 0
    %10 = vsyncpa [#allocation4], 0
    // Predicated region
    $region2: #{tpu_custom_call.1} parent=1 // pred_check
      _
    $region3: #{tpu_custom_call.1} parent=1 // pred_check_branch
      %12 = sbr.rel (0) target = $region5
    $region4: #{tpu_custom_call.1} parent=1 // pred_region
      %s14 = ssub.s32 256, 256
      %15 = vsyncadd [#allocation3], %s14
      %s16 = sshll.u32 [#allocation2], 4
      %s17 = int_to_ptr.vmem [resolvable:$true] %s16
      %22 = dma.hbm_to_vmem [thread:$0]  %s0, 256, %s17, [#allocation3], 128, 128, 8
    $region5: #{tpu_custom_call.1} parent=1 // pred_fallthru
      _
    // Predicated region
    $region6: #{tpu_custom_call.1} parent=1 // pred_check
      _
    $region7: #{tpu_custom_call.1} parent=1 // pred_check_branch
      %24 = sbr.rel (0) target = $region9
    $region8: #{tpu_custom_call.1} parent=1 // pred_region
      %s26 = ssub.s32 256, 256
      %27 = vsyncadd [#allocation6], %s26
      %s28 = sshll.u32 [#allocation5], 4
      %s29 = int_to_ptr.vmem [resolvable:$true] %s28
      %34 = dma.hbm_to_vmem [thread:$0]  %s1, 256, %s29, [#allocation6], 128, 128, 8
    $region9: #{tpu_custom_call.1} parent=1 // pred_fallthru
      _
    // Predicated region
    $region10: #{tpu_custom_call.1} parent=1 // pred_check
      _
    $region11: #{tpu_custom_call.1} parent=1 // pred_check_branch
      %36 = sbr.rel (0) target = $region13
    $region12: #{tpu_custom_call.1} parent=1 // pred_region
      _
    $region13: #{tpu_custom_call.1} parent=1 // pred_fallthru
      _
    // Predicated region
    $region14: #{tpu_custom_call.1} parent=1 // pred_check
      _
    $region15: #{tpu_custom_call.1} parent=1 // pred_check_branch
      %38 = sbr.rel (0) target = $region17
    $region16: #{tpu_custom_call.1} parent=1 // pred_region
      %39 = dma.done [#allocation3], 256
    $region17: #{tpu_custom_call.1} parent=1 // pred_fallthru
      _
    // Predicated region
    $region18: #{tpu_custom_call.1} parent=1 // pred_check
      _
    $region19: #{tpu_custom_call.1} parent=1 // pred_check_branch
      %41 = sbr.rel (0) target = $region21
    $region20: #{tpu_custom_call.1} parent=1 // pred_region
      %42 = dma.done [#allocation6], 256
    $region21: #{tpu_custom_call.1} parent=1 // pred_fallthru
      _
    %v43 = vld [vmem:[#allocation2] sm:$0xff]
    %v44 = vld [vmem:[#allocation2 + $0x8] sm:$0x3f]
    %v45 = vld [vmem:[#allocation5] sm:$0xff]
    %v46 = vld [vmem:[#allocation5 + $0x8] sm:$0xff]
    %v47 = vld [vmem:[%s2] sm:$0x1]
    %v49 = vlaneseq
    %v50 = vshrl.u32 %v49, 7
    %v51 = vsub.s32 0, %v50
    %v52 = vrot.slane %v47, %v51
    %vm54 = vcmask 130048
    %v56 = vsel %vm54, %v43, 0
    %v59 = vsel %vm54, %v44, 0
    %61 = vmatprep.subr.mxu0 0.0
    %62 = vmatpush1.msra.mxu0 %v45
    %63 = vmatprep.subr.mxu0 0.0
    %64 = vmatpush1.msra.mxu0 %v46
    %65 = vmatprep.subr.mxu0 0.0
    %66 = vmatpush1.msra.mxu0 0.0
    %67 = vmatprep.subr.mxu0 0.0
    %68 = vmatpush1.msra.mxu0 0.0
    %69 = vmatprep.subr.mxu0 0.0
    %70 = vmatpush1.msra.mxu0 0.0
    %71 = vmatprep.subr.mxu0 0.0
    %72 = vmatpush1.msra.mxu0 0.0
    %73 = vmatprep.subr.mxu0 0.0
    %74 = vmatpush1.msra.mxu0 0.0
    %75 = vmatprep.subr.mxu0 0.0
    %76 = vmatpush1.msra.mxu0 0.0
    %77 = vmatprep.subr.mxu0 0.0
    %78 = vmatpush1.msra.mxu0 0.0
    %79 = vmatprep.subr.mxu0 0.0
    %80 = vmatpush1.msra.mxu0 0.0
    %81 = vmatprep.subr.mxu0 0.0
    %82 = vmatpush1.msra.mxu0 0.0
    %83 = vmatprep.subr.mxu0 0.0
    %84 = vmatpush1.msra.mxu0 0.0
    %85 = vmatprep.subr.mxu0 0.0
    %86 = vmatpush1.msra.mxu0 0.0
    %87 = vmatprep.subr.mxu0 0.0
    %88 = vmatpush1.msra.mxu0 0.0
    %89 = vmatprep.subr.mxu0 0.0
    %90 = vmatpush1.msra.mxu0 0.0
    %91 = vmatprep.subr.mxu0 0.0
    %92 = vmatpush1.msra.mxu0 0.0
    %93 = vmatprep.subr.mxu0 0.0
    %94 = vmatpush1.msra.mxu0 0.0
    %95 = vmatprep.subr.mxu0 0.0
    %96 = vmatpush1.msra.mxu0 0.0
    %97 = vmatprep.subr.mxu0 0.0
    %98 = vmatpush1.msra.mxu0 0.0
    %99 = vmatprep.subr.mxu0 0.0
    %100 = vmatpush1.msra.mxu0 0.0
    %101 = vmatprep.subr.mxu0 0.0
    %102 = vmatpush1.msra.mxu0 0.0
    %103 = vmatprep.subr.mxu0 0.0
    %104 = vmatpush1.msra.mxu0 0.0
    %105 = vmatprep.subr.mxu0 0.0
    %106 = vmatpush1.msra.mxu0 0.0
    %107 = vmatprep.subr.mxu0 0.0
    %108 = vmatpush1.msra.mxu0 0.0
    %109 = vmatprep.subr.mxu0 0.0
    %110 = vmatpush1.msra.mxu0 0.0
    %111 = vmatprep.subr.mxu0 0.0
    %112 = vmatpush1.msra.mxu0 0.0
    %113 = vmatprep.subr.mxu0 0.0
    %114 = vmatpush1.msra.mxu0 0.0
    %115 = vmatprep.subr.mxu0 0.0
    %116 = vmatpush1.msra.mxu0 0.0
    %117 = vmatprep.subr.mxu0 0.0
    %118 = vmatpush1.msra.mxu0 0.0
    %119 = vmatprep.subr.mxu0 0.0
    %120 = vmatpush1.msra.mxu0 0.0
    %121 = vmatprep.subr.mxu0 0.0
    %122 = vmatpush1.msra.mxu0 0.0
    %123 = vmatprep.subr.mxu0 0.0
    %124 = vmatpush1.msra.mxu0 0.0
    %125 = vmatprep.mubr.f32.mxu0 0.0
    %126 = vmatmul.mubr.f32.gmra.mrb[0].mxu0 %v56
    %v127 = vpop.f32.mrb[0].mxu0
    %v128 = vadd.f32 %v52, %v127
    %v129 = vpop.f32.mrb[0].mxu0
    %130 = vmatprep.mubr.f32.mxu0 0.0
    %131 = vmatmul.mubr.f32.gmra.mrb[0].mxu0 %v59
    %v132 = vpop.f32.mrb[0].mxu0
    %v133 = vadd.f32 %v52, %v132
    %v134 = vpop.f32.mrb[0].mxu0
    %135 = vdwg.mxu0
    %v136 = vmax.f32 %v128, 0.0
    %v137 = vmax.f32 %v133, 0.0
    %138 = vst.msk [vmem:[#allocation7] sm:$0xff] %vm54, %v136
    %vm139 = vcmask 128000
    %140 = vst.msk [vmem:[#allocation7 + $0x8] sm:$0x3f] %vm139, %v137
    // Predicated region
    $region22: #{tpu_custom_call.1} parent=1 // pred_check
      _
    $region23: #{tpu_custom_call.1} parent=1 // pred_check_branch
      %142 = sbr.rel (0) target = $region25
    $region24: #{tpu_custom_call.1} parent=1 // pred_region
      %s144 = ssub.s32 256, 256
      %145 = vsyncadd [#allocation4], %s144
      %s146 = sshll.u32 [#allocation7], 4
      %s147 = int_to_ptr.vmem [resolvable:$true] %s146
      %152 = dma.vmem_to_hbm [thread:$0]  %s147, 256, %s3, [#allocation4], 128, 128, 8
    $region25: #{tpu_custom_call.1} parent=1 // pred_fallthru
      _
    // Predicated region
    $region26: #{tpu_custom_call.1} parent=1 // pred_check
      _
    $region27: #{tpu_custom_call.1} parent=1 // pred_check_branch
      %154 = sbr.rel (0) target = $region29
    $region28: #{tpu_custom_call.1} parent=1 // pred_region
      %155 = dma.done [#allocation4], 256
    $region29: #{tpu_custom_call.1} parent=1 // pred_fallthru
      _
    %156 = vsyncpa [#allocation3], 1
    %157 = vsyncpa [#allocation6], 1
    %158 = vsyncpa [#allocation4], 1

</llo_original>
